<compile_context>
chip_gen: v5e
topology: v5e:2x2
jax: 0.10.0
libtpu: 0.0.40
codegen_flags: <defaults>
</compile_context>

<pallas_src>
import functools
import inspect

import jax
import jax.numpy as jnp
from jax.experimental import pallas as pl
from jax.experimental.pallas import tpu as pltpu

_MIB = 1024 * 1024


def _round_up(a, b):
    return (a + b - 1) // b * b


def _supports_single_buffering():
    if not hasattr(pl, "Buffered"):
        return False
    try:
        return "pipeline_mode" in inspect.signature(pl.BlockSpec).parameters
    except (TypeError, ValueError):
        return True


_HAS_BUFFERED = _supports_single_buffering()


def _single_buffered():
    """BlockSpec kwargs for grid-invariant blocks (1 VMEM buffer instead of 2)."""
    return dict(pipeline_mode=pl.Buffered(1)) if _HAS_BUFFERED else {}


def _vmem_capacity_bytes():
    """Physical VMEM per TensorCore: 64 MiB (v7x) / 128 MiB (v5e, v6e)."""
    default = 64 * _MIB  # conservative fallback (v7x)
    try:
        info = pltpu.get_tpu_info()
    except Exception:  # non-TPU backend / emulation: stay conservative
        return default
    cap = getattr(info, "vmem_capacity_bytes", None)
    return int(cap) if cap else default


def _sublane_align(nbytes):
    return {1: 32, 2: 16}.get(nbytes, 8)


def _gelu(x, approximate):
    """GELU in f32.  Exact variant uses an erf polynomial (|err| <= 1.5e-7)
    built only from exp/mul/add/select so it lowers on all TPU generations;
    the tanh variant rides the EUP slot (preferred on v5e)."""
    if approximate:
        c = 0.7978845608028654  # sqrt(2/pi)
        return 0.5 * x * (1.0 + jnp.tanh(c * (x + 0.044715 * x * x * x)))
    # erf(x / sqrt(2)) via Abramowitz & Stegun 7.1.26.
    z = x * 0.7071067811865476
    az = jnp.abs(z)
    t = 1.0 / (1.0 + 0.3275911 * az)
    poly = ((((1.061405429 * t - 1.453152027) * t + 1.421413741) * t
             - 0.284496736) * t + 0.254829592) * t
    erf_abs = 1.0 - poly * jnp.exp(-az * az)
    erf = jnp.where(z >= 0.0, erf_abs, -erf_abs)
    return 0.5 * x * (1.0 + erf)


# ---------------------------------------------------------------------------
# Kernels
# ---------------------------------------------------------------------------
def _mlp_kernel_w1res(x_ref, w1_ref, b1_ref, w2_ref, b2_ref, o_ref, h_ref, *,
                      approximate, compute_dtype):
    """fc1 weight resident.  The fc1 activation is computed once per row tile
    (at j == 0), stashed in VMEM scratch, and reused across all lane-dense fc2
    output tiles of that row tile."""
    @pl.when(pl.program_id(1) == 0)
    def _():
        xc = x_ref[...].astype(compute_dtype)          # cast in-kernel (not in wrapper)
        h = jnp.dot(xc, w1_ref[...], preferred_element_type=jnp.float32)
        h = _gelu(h + b1_ref[...], approximate)
        h_ref[...] = h.astype(h_ref.dtype)

    o = jnp.dot(h_ref[...], w2_ref[...], preferred_element_type=jnp.float32)
    o_ref[...] = (o + b2_ref[...]).astype(o_ref.dtype)


def _mlp_kernel_htiled(x_ref, w1_ref, b1_ref, w2_ref, b2_ref, o_ref, acc_ref, *,
                       approximate, compute_dtype):
    """Hidden dimension streamed in chunks (w1/w2 never fully resident); fc2
    contraction accumulated in f32 and written out at the last chunk."""
    k = pl.program_id(1)

    @pl.when(k == 0)
    def _():
        acc_ref[...] = jnp.zeros_like(acc_ref)

    xc = x_ref[...].astype(compute_dtype)
    h = jnp.dot(xc, w1_ref[...], preferred_element_type=jnp.float32)
    h = _gelu(h + b1_ref[...], approximate)
    acc_ref[...] += jnp.dot(h.astype(compute_dtype), w2_ref[...],
                            preferred_element_type=jnp.float32)

    @pl.when(k == pl.num_programs(1) - 1)
    def _():
        o_ref[...] = (acc_ref[...] + b2_ref[...]).astype(o_ref.dtype)


# ---------------------------------------------------------------------------
# Wrapper
# ---------------------------------------------------------------------------
def mlp_forward(x, w1, b1, w2, b2, *, tm=None, tn=None, th=None,
                compute_dtype=jnp.bfloat16, approximate_gelu=False,
                mode="auto"):
    """Forward pass of Mlp: gelu(x @ w1 + b1) @ w2 + b2.

    x: (B, L, C); w1: (C, H); b1: (H,); w2: (H, O); b2: (O,) -> (B, L, O).

    compute_dtype: MXU operand dtype (accumulation is always f32).  bf16 is
    the recommended default (2x MXU throughput, half the weight bytes,
    strongly preferred on v5e); pass jnp.float32 for fp32 numerics.
    mode: "auto" | "resident" (w1+w2 resident in VMEM) | "tiled" (w1 resident,
    w2 streamed per output tile) | "htile" (hidden dim streamed in chunks).
    """
    if mode not in ("auto", "resident", "tiled", "htile"):
        raise ValueError(f"unknown mode: {mode!r}")

    B, L, C = x.shape
    H = w1.shape[1]
    O = w2.shape[1]
    M = B * L

    x_bytes = jnp.dtype(x.dtype).itemsize
    cbytes = jnp.dtype(compute_dtype).itemsize
    out_dtype = x.dtype
    obytes = jnp.dtype(out_dtype).itemsize
    cast_x = jnp.dtype(compute_dtype) != jnp.dtype(x.dtype)

    # ---- generation-aware VMEM budget -------------------------------------
    capacity = _vmem_capacity_bytes()            # 64 MiB (v7x) / 128 MiB (v5e/v6e)
    budget = (capacity * 3) // 4                 # planning budget: 48 / 96 MiB
    vmem_cap = min(capacity - 8 * _MIB, (capacity * 7) // 8)   # 56 / 112 MiB

    # ---- tile alignment ----------------------------------------------------
    row_align = max(_sublane_align(cbytes), _sublane_align(x_bytes),
                    _sublane_align(obytes))
    Op128 = _round_up(O, 128)                    # lane-dense output stores

    tm_req = 1024 if tm is None else tm
    tn_req = 512 if tn is None else tn
    th_req = 512 if th is None else th

    M_al = _round_up(M, row_align)
    tm_floor = max(row_align, min(64, M_al))

    def row_tile(req):
        t = _round_up(min(req, M_al), row_align)
        # Keep >= 2 row blocks so the "parallel" row axis can shard across
        # v7x's two TensorCores (no-op for small M / small requested tiles).
        if M_al >= 512:
            t = min(t, _round_up((M_al + 1) // 2, row_align))
        return max(t, row_align)

    def shrink_tm(t):
        return max(tm_floor, _round_up(t // 2, row_align))

    w1buf = 1 if _HAS_BUFFERED else 2
    w2buf = w1buf

    # ---- per-config VMEM estimates (bytes) ---------------------------------
    def est_resident(tm_):
        return (2 * tm_ * C * x_bytes                        # x tiles (dbl buffered)
                + (tm_ * C * cbytes if cast_x else 0)        # in-kernel x cast
                + w1buf * C * H * cbytes + 8 * H * 4         # fc1 weight + bias
                + w2buf * H * Op128 * cbytes + 8 * Op128 * 4  # fc2 weight + bias
                + 2 * tm_ * Op128 * obytes                   # output tiles
                + tm_ * H * cbytes                           # fc1 activation scratch
                + tm_ * H * 4)                               # f32 fc1 dot/GELU temp

    def est_tiled(tm_, tn_):
        return (2 * tm_ * C * x_bytes
                + (tm_ * C * cbytes if cast_x else 0)
                + w1buf * C * H * cbytes + 8 * H * 4
                + 2 * (H * tn_ * cbytes + 8 * tn_ * 4)       # streamed fc2 tiles
                + 2 * tm_ * tn_ * obytes
                + tm_ * H * cbytes
                + tm_ * H * 4)

    def est_htile(tm_, th_):
        return (2 * tm_ * C * x_bytes
                + (tm_ * C * cbytes if cast_x else 0)
                + 2 * (C * th_ * cbytes + 8 * th_ * 4)       # streamed fc1 chunks
                + 2 * th_ * Op128 * cbytes + 8 * Op128 * 4   # streamed fc2 chunks
                + 2 * tm_ * Op128 * obytes
                + tm_ * Op128 * 4                            # f32 accumulator
                + tm_ * th_ * (4 + cbytes))                  # f32 fc1 chunk + cast

    # ---- configuration selection (first fit, fail loudly otherwise) --------
    w1_fits = C * H * cbytes <= budget // 3
    allow_resident = mode == "resident" or (mode == "auto" and w1_fits)
    allow_tiled = mode == "tiled" or (mode == "auto" and w1_fits)
    allow_htile = mode in ("auto", "htile")

    cfg = None
    if allow_resident:
        t = row_tile(tm_req)
        while est_resident(t) > budget and t > tm_floor:
            t = shrink_tm(t)
        if est_resident(t) <= budget:
            cfg = ("resident", t, Op128)

    if cfg is None and allow_tiled:
        t = row_tile(tm_req)
        n = min(_round_up(tn_req, 128), Op128)
        while est_tiled(t, n) > budget and t > tm_floor:
            t = shrink_tm(t)
        while est_tiled(t, n) > budget and n > 128:
            n = max(128, _round_up(n // 2, 128))
        if est_tiled(t, n) <= budget:
            cfg = ("tiled", t, n)

    if cfg is None and allow_htile:
        t = row_tile(tm_req)
        hchunk = min(_round_up(th_req, 128), _round_up(H, 128))
        while est_htile(t, hchunk) > budget and hchunk > 128:
            hchunk = max(128, _round_up(hchunk // 2, 128))
        while est_htile(t, hchunk) > budget and t > tm_floor:
            t = shrink_tm(t)
        if est_htile(t, hchunk) <= budget:
            cfg = ("htile", t, hchunk)

    if cfg is None:
        raise ValueError(
            f"Mlp Pallas kernel does not fit the VMEM budget ({budget} bytes): "
            f"C={C}, H={H}, O={O}, mode={mode!r}, compute_dtype={compute_dtype}.")

    kind, tm_eff, second = cfg
    if kind == "htile":
        th_eff = second
        Hp = _round_up(H, th_eff)
        Op = Op128
        est = est_htile(tm_eff, th_eff)
    elif kind == "tiled":
        tn_eff = second
        Hp = H
        Op = _round_up(Op128, tn_eff)
        est = est_tiled(tm_eff, tn_eff)
    else:  # resident
        tn_eff = second
        Hp = H
        Op = Op128
        est = est_resident(tm_eff)

    Mp = _round_up(M, tm_eff)

    # ---- operand preparation -----------------------------------------------
    x2 = x.reshape(M, C)
    if Mp != M:
        x2 = jnp.pad(x2, ((0, Mp - M), (0, 0)))   # rows only; cast happens in-kernel

    w1c = w1.astype(compute_dtype)
    b1_2d = b1.reshape(1, H).astype(jnp.float32)
    w2c = w2.astype(compute_dtype)
    b2_2d = b2.reshape(1, O).astype(jnp.float32)
    if Hp != H:
        w1c = jnp.pad(w1c, ((0, 0), (0, Hp - H)))
        b1_2d = jnp.pad(b1_2d, ((0, 0), (0, Hp - H)))
        w2c = jnp.pad(w2c, ((0, Hp - H), (0, 0)))
    if Op != O:
        w2c = jnp.pad(w2c, ((0, 0), (0, Op - O)))
        b2_2d = jnp.pad(b2_2d, ((0, 0), (0, Op - O)))

    sb = _single_buffered()

    if kind == "htile":
        grid = (Mp // tm_eff, Hp // th_eff)
        in_specs = [
            pl.BlockSpec((tm_eff, C), lambda i, k: (i, 0)),
            pl.BlockSpec((C, th_eff), lambda i, k: (0, k)),
            pl.BlockSpec((1, th_eff), lambda i, k: (0, k)),
            pl.BlockSpec((th_eff, Op), lambda i, k: (k, 0)),
            pl.BlockSpec((1, Op), lambda i, k: (0, 0), **sb),
        ]
        out_specs = pl.BlockSpec((tm_eff, Op), lambda i, k: (i, 0))
        scratch = [pltpu.VMEM((tm_eff, Op), jnp.float32)]
        kernel = functools.partial(_mlp_kernel_htiled,
                                   approximate=approximate_gelu,
                                   compute_dtype=compute_dtype)
        n_w1_streams = Mp // tm_eff
        n_w2_streams = Mp // tm_eff
    else:
        grid = (Mp // tm_eff, Op // tn_eff)
        if kind == "resident":
            w2_spec = pl.BlockSpec((Hp, Op), lambda i, j: (0, 0), **sb)
            b2_spec = pl.BlockSpec((1, Op), lambda i, j: (0, 0), **sb)
            n_w2_streams = 1
        else:
            w2_spec = pl.BlockSpec((Hp, tn_eff), lambda i, j: (0, j))
            b2_spec = pl.BlockSpec((1, tn_eff), lambda i, j: (0, j))
            n_w2_streams = Mp // tm_eff
        in_specs = [
            pl.BlockSpec((tm_eff, C), lambda i, j: (i, 0)),
            pl.BlockSpec((C, Hp), lambda i, j: (0, 0), **sb),
            pl.BlockSpec((1, Hp), lambda i, j: (0, 0), **sb),
            w2_spec,
            b2_spec,
        ]
        out_specs = pl.BlockSpec((tm_eff, tn_eff), lambda i, j: (i, j))
        scratch = [pltpu.VMEM((tm_eff, Hp), compute_dtype)]
        kernel = functools.partial(_mlp_kernel_w1res,
                                   approximate=approximate_gelu,
                                   compute_dtype=compute_dtype)
        n_w1_streams = 1

    cost = pl.CostEstimate(
        flops=2 * M * (C * H + H * O),
        transcendentals=M * H,
        bytes_accessed=int(Mp * C * x_bytes
                           + n_w1_streams * C * Hp * cbytes
                           + n_w2_streams * Hp * Op * cbytes
                           + Hp * 4 + Op * 4
                           + Mp * Op * obytes),
    )

    vmem_limit = int(min(vmem_cap, max(32 * _MIB, int(1.25 * est))))

    out2 = pl.pallas_call(
        kernel,
        out_shape=jax.ShapeDtypeStruct((Mp, Op), out_dtype),
        grid_spec=pltpu.PrefetchScalarGridSpec(
            num_scalar_prefetch=0,
            grid=grid,
            in_specs=in_specs,
            out_specs=out_specs,
            scratch_shapes=scratch,
        ),
        compiler_params=pltpu.CompilerParams(
            dimension_semantics=("parallel", "arbitrary"),
            vmem_limit_bytes=vmem_limit,
        ),
        cost_estimate=cost,
    )(x2, w1c, b1_2d, w2c, b2_2d)

    return out2[:M, :O].reshape(B, L, O)


# ---------------------------------------------------------------------------
# Self-test
# ---------------------------------------------------------------------------
if __name__ == "__main__":
    key = jax.random.PRNGKey(0)

    def make_params(k, C, H, O):
        k1, kb1, k2, kb2 = jax.random.split(k, 4)
        bound1 = 1.0 / (C ** 0.5)
        w1 = jax.random.uniform(k1, (C, H), jnp.float32, -bound1, bound1)
        b1 = jax.random.uniform(kb1, (H,), jnp.float32, -bound1, bound1)
        bound2 = 1.0 / (H ** 0.5)
        w2 = jax.random.uniform(k2, (H, O), jnp.float32, -bound2, bound2)
        b2 = jax.random.uniform(kb2, (O,), jnp.float32, -bound2, bound2)
        return w1, b1, w2, b2

    def reference(x, w1, b1, w2, b2):
        B, L, C = x.shape
        hp = jax.lax.Precision.HIGHEST
        h = jax.nn.gelu(jnp.dot(x.reshape(-1, C), w1, precision=hp) + b1,
                        approximate=False)
        o = jnp.dot(h, w2, precision=hp) + b2
        return o.reshape(B, L, -1)

    # --- Case 1: module-default small shapes (B, L, C); O defaults to C ----
    B, L, C, H = 2, 8, 32, 64
    O = C
    kx, kp, key = jax.random.split(key, 3)
    x = jax.random.normal(kx, (B, L, C), dtype=jnp.float32)
    w1, b1, w2, b2 = make_params(kp, C, H, O)
    ref = reference(x, w1, b1, w2, b2)

    out_f32 = mlp_forward(x, w1, b1, w2, b2, compute_dtype=jnp.float32)
    jax.block_until_ready(out_f32)
    assert out_f32.shape == (B, L, O)
    assert jnp.allclose(out_f32, ref, atol=1e-2, rtol=1e-2)

    out_bf16 = mlp_forward(x, w1, b1, w2, b2)  # default bf16 MXU path, f32 accum
    jax.block_until_ready(out_bf16)
    assert out_bf16.shape == (B, L, O)
    assert jnp.allclose(out_bf16, ref, atol=5e-2, rtol=5e-2)

    # --- Case 2: row padding (M=300 -> 384) + tiled lane-dense fc2 output --
    B2, L2, C2, H2, O2 = 3, 100, 128, 256, 384
    kx2, kp2, key = jax.random.split(key, 3)
    xb = jax.random.normal(kx2, (B2, L2, C2), dtype=jnp.float32)
    params2 = make_params(kp2, C2, H2, O2)
    ref2 = reference(xb, *params2)
    out2 = mlp_forward(xb, *params2, tm=128, tn=128,
                       compute_dtype=jnp.float32, mode="tiled")
    jax.block_until_ready(out2)
    assert out2.shape == (B2, L2, O2)
    assert jnp.allclose(out2, ref2, atol=1e-2, rtol=1e-2)

    # --- Case 3: H-tiled streamed-weight path with padded H (320 -> 384) ---
    B3, L3, C3, H3, O3 = 2, 40, 128, 320, 256
    kx3, kp3, key = jax.random.split(key, 3)
    xc = jax.random.normal(kx3, (B3, L3, C3), dtype=jnp.float32)
    params3 = make_params(kp3, C3, H3, O3)
    ref3 = reference(xc, *params3)
    out3 = mlp_forward(xc, *params3, tm=64, th=128,
                       compute_dtype=jnp.float32, mode="htile")
    jax.block_until_ready(out3)
    assert out3.shape == (B3, L3, O3)
    assert jnp.allclose(out3, ref3, atol=1e-2, rtol=1e-2)

    print("KERNEL_OK")
</pallas_src>

<mosaic_0001>
module attributes {stable_mosaic.version = 11 : i64} {
  func.func @_mlp_kernel_w1res(%arg0: i32, %arg1: i32, %arg2: memref<16x32xf32, #tpu.memory_space<vmem>>, %arg3: memref<32x64xf32, #tpu.memory_space<vmem>>, %arg4: memref<1x64xf32, #tpu.memory_space<vmem>>, %arg5: memref<64x128xf32, #tpu.memory_space<vmem>>, %arg6: memref<1x128xf32, #tpu.memory_space<vmem>>, %arg7: memref<16x128xf32, #tpu.memory_space<vmem>>, %arg8: memref<16x64xf32, #tpu.memory_space<vmem>>) attributes {dimension_semantics = [#tpu.dimension_semantics<parallel>, #tpu.dimension_semantics<arbitrary>], iteration_bounds = array<i64: 1, 1>, scalar_prefetch = 0 : i64, scratch_operands = 1 : i64, tpu.core_type = #tpu.core_type<tc>, window_params = [{transform_indices = @transform_0, window_bounds = array<i64: 16, 32>}, {pipeline_mode = #tpu.pipeline_mode<synchronous>, transform_indices = @transform_1, window_bounds = array<i64: 32, 64>}, {pipeline_mode = #tpu.pipeline_mode<synchronous>, transform_indices = @transform_2, window_bounds = array<i64: 1, 64>}, {pipeline_mode = #tpu.pipeline_mode<synchronous>, transform_indices = @transform_3, window_bounds = array<i64: 64, 128>}, {pipeline_mode = #tpu.pipeline_mode<synchronous>, transform_indices = @transform_4, window_bounds = array<i64: 1, 128>}, {transform_indices = @transform_5, window_bounds = array<i64: 16, 128>}]} {
    %c0_i32 = arith.constant 0 : i32
    %0 = arith.cmpi eq, %arg1, %c0_i32 : i32
    %1 = arith.extui %0 : i1 to i32
    %c0_i32_0 = arith.constant 0 : i32
    %2 = arith.cmpi ne, %1, %c0_i32_0 : i32
    scf.if %2 {
      %c0_8 = arith.constant 0 : index
      %c0_9 = arith.constant 0 : index
      %10 = vector.load %arg2[%c0_8, %c0_9] : memref<16x32xf32, #tpu.memory_space<vmem>>, vector<16x32xf32>
      %c0_10 = arith.constant 0 : index
      %c0_11 = arith.constant 0 : index
      %11 = vector.load %arg3[%c0_10, %c0_11] : memref<32x64xf32, #tpu.memory_space<vmem>>, vector<32x64xf32>
      %cst_12 = arith.constant dense<0.000000e+00> : vector<16x64xf32>
      %12 = tpu.matmul %10, %11, %cst_12 {dimension_numbers = #tpu.dot_dimension_numbers<[1], [0], [0], [1], [0, 0, 1, 1], [], []>} : vector<16x32xf32>, vector<32x64xf32>, vector<16x64xf32> -> vector<16x64xf32>
      %c0_13 = arith.constant 0 : index
      %c0_14 = arith.constant 0 : index
      %13 = vector.load %arg4[%c0_13, %c0_14] : memref<1x64xf32, #tpu.memory_space<vmem>>, vector<1x64xf32>
      %14 = vector.broadcast %13 : vector<1x64xf32> to vector<16x64xf32>
      %15 = arith.addf %12, %14 : vector<16x64xf32>
      %cst_15 = arith.constant 0.707106769 : f32
      %16 = vector.broadcast %cst_15 : f32 to vector<16x64xf32>
      %17 = arith.mulf %15, %16 : vector<16x64xf32>
      %18 = math.absf %17 : vector<16x64xf32>
      %cst_16 = arith.constant 0.327591091 : f32
      %19 = vector.broadcast %cst_16 : f32 to vector<16x64xf32>
      %20 = arith.mulf %19, %18 : vector<16x64xf32>
      %cst_17 = arith.constant 1.000000e+00 : f32
      %21 = vector.broadcast %cst_17 : f32 to vector<16x64xf32>
      %22 = arith.addf %21, %20 : vector<16x64xf32>
      %cst_18 = arith.constant 1.000000e+00 : f32
      %23 = vector.broadcast %cst_18 : f32 to vector<16x64xf32>
      %24 = arith.divf %23, %22 : vector<16x64xf32>
      %cst_19 = arith.constant 1.06140542 : f32
      %25 = vector.broadcast %cst_19 : f32 to vector<16x64xf32>
      %26 = arith.mulf %25, %24 : vector<16x64xf32>
      %cst_20 = arith.constant 1.45315206 : f32
      %27 = vector.broadcast %cst_20 : f32 to vector<16x64xf32>
      %28 = arith.subf %26, %27 : vector<16x64xf32>
      %29 = arith.mulf %28, %24 : vector<16x64xf32>
      %cst_21 = arith.constant 1.42141378 : f32
      %30 = vector.broadcast %cst_21 : f32 to vector<16x64xf32>
      %31 = arith.addf %29, %30 : vector<16x64xf32>
      %32 = arith.mulf %31, %24 : vector<16x64xf32>
      %cst_22 = arith.constant 0.284496725 : f32
      %33 = vector.broadcast %cst_22 : f32 to vector<16x64xf32>
      %34 = arith.subf %32, %33 : vector<16x64xf32>
      %35 = arith.mulf %34, %24 : vector<16x64xf32>
      %cst_23 = arith.constant 0.254829586 : f32
      %36 = vector.broadcast %cst_23 : f32 to vector<16x64xf32>
      %37 = arith.addf %35, %36 : vector<16x64xf32>
      %38 = arith.mulf %37, %24 : vector<16x64xf32>
      %cst_24 = arith.constant 0.000000e+00 : f32
      %39 = vector.broadcast %cst_24 : f32 to vector<16x64xf32>
      %40 = arith.subf %39, %18 : vector<16x64xf32>
      %41 = arith.mulf %40, %18 : vector<16x64xf32>
      %42 = math.exp %41 : vector<16x64xf32>
      %43 = arith.mulf %38, %42 : vector<16x64xf32>
      %cst_25 = arith.constant 1.000000e+00 : f32
      %44 = vector.broadcast %cst_25 : f32 to vector<16x64xf32>
      %45 = arith.subf %44, %43 : vector<16x64xf32>
      %cst_26 = arith.constant 0.000000e+00 : f32
      %46 = vector.broadcast %cst_26 : f32 to vector<16x64xf32>
      %47 = arith.cmpf oge, %17, %46 : vector<16x64xf32>
      %cst_27 = arith.constant 0.000000e+00 : f32
      %48 = vector.broadcast %cst_27 : f32 to vector<16x64xf32>
      %49 = arith.subf %48, %45 : vector<16x64xf32>
      %50 = arith.select %47, %45, %49 : vector<16x64xi1>, vector<16x64xf32>
      %cst_28 = arith.constant 5.000000e-01 : f32
      %51 = vector.broadcast %cst_28 : f32 to vector<16x64xf32>
      %52 = arith.mulf %51, %15 : vector<16x64xf32>
      %cst_29 = arith.constant 1.000000e+00 : f32
      %53 = vector.broadcast %cst_29 : f32 to vector<16x64xf32>
      %54 = arith.addf %53, %50 : vector<16x64xf32>
      %55 = arith.mulf %52, %54 : vector<16x64xf32>
      %c0_30 = arith.constant 0 : index
      %c0_31 = arith.constant 0 : index
      %56 = vector.load %arg8[%c0_30, %c0_31] : memref<16x64xf32, #tpu.memory_space<vmem>>, vector<16x64xf32>
      tpu.vector_store %arg8[%c0_30, %c0_31], %55 {strides = array<i32>} : memref<16x64xf32, #tpu.memory_space<vmem>>, vector<16x64xf32>,
    } else {
    }
    %c0 = arith.constant 0 : index
    %c0_1 = arith.constant 0 : index
    %3 = vector.load %arg8[%c0, %c0_1] : memref<16x64xf32, #tpu.memory_space<vmem>>, vector<16x64xf32>
    %c0_2 = arith.constant 0 : index
    %c0_3 = arith.constant 0 : index
    %4 = vector.load %arg5[%c0_2, %c0_3] : memref<64x128xf32, #tpu.memory_space<vmem>>, vector<64x128xf32>
    %cst = arith.constant dense<0.000000e+00> : vector<16x128xf32>
    %5 = tpu.matmul %3, %4, %cst {dimension_numbers = #tpu.dot_dimension_numbers<[1], [0], [0], [1], [0, 0, 1, 1], [], []>} : vector<16x64xf32>, vector<64x128xf32>, vector<16x128xf32> -> vector<16x128xf32>
    %c0_4 = arith.constant 0 : index
    %c0_5 = arith.constant 0 : index
    %6 = vector.load %arg6[%c0_4, %c0_5] : memref<1x128xf32, #tpu.memory_space<vmem>>, vector<1x128xf32>
    %7 = vector.broadcast %6 : vector<1x128xf32> to vector<16x128xf32>
    %8 = arith.addf %5, %7 : vector<16x128xf32>
    %c0_6 = arith.constant 0 : index
    %c0_7 = arith.constant 0 : index
    %9 = vector.load %arg7[%c0_6, %c0_7] : memref<16x128xf32, #tpu.memory_space<vmem>>, vector<16x128xf32>
    tpu.vector_store %arg7[%c0_6, %c0_7], %8 {strides = array<i32>} : memref<16x128xf32, #tpu.memory_space<vmem>>, vector<16x128xf32>,
    return
  }
  func.func @transform_0(%arg0: i32, %arg1: i32) -> (i32, i32) {
    %c0_i32 = arith.constant 0 : i32
    %c0_i32_0 = arith.constant 0 : i32
    return %arg0, %c0_i32 : i32, i32
  }
  func.func @transform_1(%arg0: i32, %arg1: i32) -> (i32, i32) {
    %c0_i32 = arith.constant 0 : i32
    %c0_i32_0 = arith.constant 0 : i32
    %c0_i32_1 = arith.constant 0 : i32
    return %c0_i32, %c0_i32_0 : i32, i32
  }
  func.func @transform_2(%arg0: i32, %arg1: i32) -> (i32, i32) {
    %c0_i32 = arith.constant 0 : i32
    %c0_i32_0 = arith.constant 0 : i32
    %c0_i32_1 = arith.constant 0 : i32
    return %c0_i32, %c0_i32_0 : i32, i32
  }
  func.func @transform_3(%arg0: i32, %arg1: i32) -> (i32, i32) {
    %c0_i32 = arith.constant 0 : i32
    %c0_i32_0 = arith.constant 0 : i32
    %c0_i32_1 = arith.constant 0 : i32
    return %c0_i32, %c0_i32_0 : i32, i32
  }
  func.func @transform_4(%arg0: i32, %arg1: i32) -> (i32, i32) {
    %c0_i32 = arith.constant 0 : i32
    %c0_i32_0 = arith.constant 0 : i32
    %c0_i32_1 = arith.constant 0 : i32
    return %c0_i32, %c0_i32_0 : i32, i32
  }
  func.func @transform_5(%arg0: i32, %arg1: i32) -> (i32, i32) {
    %c0_i32 = arith.constant 0 : i32
    return %arg0, %arg1 : i32, i32
  }
}

</mosaic_0001>

<llo_original>
// kernel: tpu_custom_call.1
$region0: #{tpu_custom_call.1}
  #allocation0 [shape = 'u32[]', space=smem, size = 0x4, offset = 0x4, fixed_abs, tag = 'smem constant byte address 0x4 - core index']
  #allocation1 [shape = 'u32[72,128]{1,0:T(1,128)}', space=vmem, size = 0x9000, scoped, tag = 'internal scratch']
  #allocation2 [shape = 'f32[16,64]{1,0:T(8,128)}', space=vmem, size = 0x2000, scoped, tag = 'scratch operand']
  %s0 = inlined_call_operand.hbm [shape: f32[16,32], index: 0, kind: input, shape index: {}]
  %s1 = inlined_call_operand.hbm [shape: f32[32,64], index: 1, kind: input, shape index: {}]
  %s2 = inlined_call_operand.vmem [shape: f32[1,64], index: 2, kind: input, shape index: {}]
  %s3 = inlined_call_operand.hbm [shape: f32[64,128], index: 3, kind: input, shape index: {}]
  %s4 = inlined_call_operand.vmem [shape: f32[1,128], index: 4, kind: input, shape index: {}]
  %s5 = inlined_call_operand.hbm [shape: f32[16,128], index: 5, kind: output, shape index: {}]
  %s6 = sld [smem:[#allocation0]]
  $region46: #{tpu_custom_call.1} parent=0
    _
  %s8 = ssub.s32 1, %s6
  %s9 = scalar_select 0, %s8, %s6
  $region1: #{tpu_custom_call.1} parent=0
    #allocation3 [shape = 'u8[8192]{0}', space=vmem, size = 0x2000, scoped, tag = 'input window, operand 0, single buffered']
    #allocation4 [shape = 's32[1]{0}', space=sflag, size = 0x4, scoped, tag = 'scoped memory for tpu_custom_call.1']
    #allocation5 [shape = 's32[1]{0}', space=sflag, size = 0x4, scoped, tag = 'scoped memory for tpu_custom_call.1']
    #allocation6 [shape = 'u8[16384]{0}', space=vmem, size = 0x4000, scoped, tag = 'input window, operand 1, single buffered']
    #allocation7 [shape = 's32[1]{0}', space=sflag, size = 0x4, scoped, tag = 'scoped memory for tpu_custom_call.1']
    #allocation8 [shape = 'u8[32768]{0}', space=vmem, size = 0x8000, scoped, tag = 'input window, operand 3, single buffered']
    #allocation9 [shape = 'u8[8192]{0}', space=vmem, size = 0x2000, scoped, tag = 'output window, operand 0, single buffered']
    %10 = vsyncpa [#allocation4], 0
    %11 = vsyncpa [#allocation7], 0
    %12 = vsyncpa [#allocation5], 0
    // Predicated region
    $region2: #{tpu_custom_call.1} parent=1 // pred_check
      _
    $region3: #{tpu_custom_call.1} parent=1 // pred_check_branch
      %14 = sbr.rel (0) target = $region5
    $region4: #{tpu_custom_call.1} parent=1 // pred_region
      %16 = vsyncadd [#allocation4], 0
      %s17 = sshll.u32 %s0, 4
      %s18 = int_to_ptr.hbm [resolvable:$true] %s17
      %s19 = sshll.u32 [#allocation3], 4
      %s20 = int_to_ptr.vmem [resolvable:$true] %s19
      %25 = dma.hbm_to_vmem [thread:$0]  %s18, 256, %s20, [#allocation4], 128, 128, 8
    $region5: #{tpu_custom_call.1} parent=1 // pred_fallthru
      _
    // Predicated region
    $region6: #{tpu_custom_call.1} parent=1 // pred_check
      _
    $region7: #{tpu_custom_call.1} parent=1 // pred_check_branch
      %27 = sbr.rel (0) target = $region9
    $region8: #{tpu_custom_call.1} parent=1 // pred_region
      %29 = vsyncadd [#allocation7], 0
      %s30 = sshll.u32 %s1, 4
      %s31 = int_to_ptr.hbm [resolvable:$true] %s30
      %s32 = sshll.u32 [#allocation6], 4
      %s33 = int_to_ptr.vmem [resolvable:$true] %s32
      %38 = dma.hbm_to_vmem [thread:$0]  %s31, 512, %s33, [#allocation7], 128, 128, 8
    $region9: #{tpu_custom_call.1} parent=1 // pred_fallthru
      _
    // Predicated region
    $region10: #{tpu_custom_call.1} parent=1 // pred_check
      _
    $region11: #{tpu_custom_call.1} parent=1 // pred_check_branch
      %40 = sbr.rel (0) target = $region13
    $region12: #{tpu_custom_call.1} parent=1 // pred_region
      _
    $region13: #{tpu_custom_call.1} parent=1 // pred_fallthru
      _
    // Predicated region
    $region14: #{tpu_custom_call.1} parent=1 // pred_check
      _
    $region15: #{tpu_custom_call.1} parent=1 // pred_check_branch
      %42 = sbr.rel (0) target = $region17
    $region16: #{tpu_custom_call.1} parent=1 // pred_region
      %44 = vsyncadd [#allocation7], 0
      %s45 = sshll.u32 %s3, 4
      %s46 = int_to_ptr.hbm [resolvable:$true] %s45
      %s47 = sshll.u32 [#allocation8], 4
      %s48 = int_to_ptr.vmem [resolvable:$true] %s47
      %53 = dma.hbm_to_vmem [thread:$0]  %s46, 1024, %s48, [#allocation7], 128, 128, 8
    $region17: #{tpu_custom_call.1} parent=1 // pred_fallthru
      _
    // Predicated region
    $region18: #{tpu_custom_call.1} parent=1 // pred_check
      _
    $region19: #{tpu_custom_call.1} parent=1 // pred_check_branch
      %55 = sbr.rel (0) target = $region21
    $region20: #{tpu_custom_call.1} parent=1 // pred_region
      _
    $region21: #{tpu_custom_call.1} parent=1 // pred_fallthru
      _
    // Predicated region
    $region22: #{tpu_custom_call.1} parent=1 // pred_check
      _
    $region23: #{tpu_custom_call.1} parent=1 // pred_check_branch
      %57 = sbr.rel (0) target = $region25
    $region24: #{tpu_custom_call.1} parent=1 // pred_region
      %59 = dma.done [#allocation4], 256
    $region25: #{tpu_custom_call.1} parent=1 // pred_fallthru
      _
    // Predicated region
    $region26: #{tpu_custom_call.1} parent=1 // pred_check
      _
    $region27: #{tpu_custom_call.1} parent=1 // pred_check_branch
      %61 = sbr.rel (0) target = $region29
    $region28: #{tpu_custom_call.1} parent=1 // pred_region
      %63 = dma.done [#allocation7], 512
    $region29: #{tpu_custom_call.1} parent=1 // pred_fallthru
      _
    // Predicated region
    $region30: #{tpu_custom_call.1} parent=1 // pred_check
      _
    $region31: #{tpu_custom_call.1} parent=1 // pred_check_branch
      %65 = sbr.rel (0) target = $region33
    $region32: #{tpu_custom_call.1} parent=1 // pred_region
      %67 = dma.done [#allocation7], 1024
    $region33: #{tpu_custom_call.1} parent=1 // pred_fallthru
      _
    %p68 = scmp.eq.s32.totalorder 0, 0
    // Predicated region
    $region34: #{tpu_custom_call.1} parent=1 // pred_check
      %p69 = pneg %p68
    $region35: #{tpu_custom_call.1} parent=1 // pred_check_branch
      %71 = sbr.rel (%p69) target = $region37
    $region36: #{tpu_custom_call.1} parent=1 // pred_region
      %v72 = vld [vmem:[#allocation3] sm:$0xff]
      %v73 = vld [vmem:[#allocation3 + $0x8] sm:$0xff]
      %v74 = vld [vmem:[#allocation6] sm:$0xff]
      %v75 = vld [vmem:[#allocation6 + $0x8] sm:$0xff]
      %v76 = vld [vmem:[#allocation6 + $0x10] sm:$0xff]
      %v77 = vld [vmem:[#allocation6 + $0x18] sm:$0xff]
      %v78 = vld [vmem:[%s2] sm:$0x1]
      %v80 = vperm.slane %v78, 0
      %vm82 = vcmask 261120
      %v84 = vsel %vm82, %v72, 0
      %v87 = vsel %vm82, %v73, 0
      %89 = vmatpush.msra.mxu0 0.0
      %90 = vmatpush.msra.mxu0 0.0
      %91 = vmatpush.msra.mxu0 0.0
      %92 = vmatpush.msra.mxu0 0.0
      %93 = vmatpush.msra.mxu0 0.0
      %94 = vmatpush.msra.mxu0 0.0
      %95 = vmatpush.msra.mxu0 0.0
      %96 = vmatpush.msra.mxu0 0.0
      %97 = vmatpush.msra.mxu0 0.0
      %98 = vmatpush.msra.mxu0 0.0
      %99 = vmatpush.msra.mxu0 0.0
      %100 = vmatpush.msra.mxu0 0.0
      %101 = vmatpush.msra.mxu0 %v77
      %102 = vmatpush.msra.mxu0 %v76
      %103 = vmatpush.msra.mxu0 %v75
      %104 = vmatpush.msra.mxu0 %v74
      %105 = vmatmul.f32.gmra.mxu0 %v84
      %v106 = vpop.f32.mrf.mxu0
      %v107 = vadd.f32 %v80, %v106
      %108 = vmatmul.f32.gmra.mxu0 %v87
      %v109 = vpop.f32.mrf.mxu0
      %v110 = vadd.f32 %v80, %v109
      %111 = vdwg.mxu0
      %v112 = vmul.f32 %v107, 0.70710677
      %v113 = vmul.f32 %v110, 0.70710677
      %v114 = vand.u32 2147483647, %v112
      %v115 = vand.u32 2147483647, %v113
      %v116 = vmul.f32 %v114, 0.3275911
      %v117 = vmul.f32 %v115, 0.3275911
      %v118 = vadd.f32 %v116, 1.0
      %v119 = vadd.f32 %v117, 1.0
      %v120 = vrcp.pop %v118
      %v121 = vmul.f32 %v118, %v120
      %v122 = vsub.f32 1.0, %v121
      %v123 = vmul.f32 %v120, %v122
      %v124 = vadd.f32 %v120, %v123
      %vm125 = vweird.f32 %v118
      %vm126 = vweird.f32 %v120
      %vm127 = vmor %vm125, %vm126
      %v128 = vsel %vm127, %v120, %v124
      %v129 = vand.u32 2147483647, %v118
      %vm130 = vcmp.eq.f32.partialorder %v129, 8.507059e+37
      %v131 = vand.u32 %v118, 2147483648
      %v132 = vor.u32 1.1754944e-38, %v131
      %v133 = vsel %vm130, %v132, %v128
      %v134 = vmul.f32 1.0, %v133
      %v135 = vrcp.pop %v119
      %v136 = vmul.f32 %v119, %v135
      %v137 = vsub.f32 1.0, %v136
      %v138 = vmul.f32 %v135, %v137
      %v139 = vadd.f32 %v135, %v138
      %vm140 = vweird.f32 %v119
      %vm141 = vweird.f32 %v135
      %vm142 = vmor %vm140, %vm141
      %v143 = vsel %vm142, %v135, %v139
      %v144 = vand.u32 2147483647, %v119
      %vm145 = vcmp.eq.f32.partialorder %v144, 8.507059e+37
      %v146 = vand.u32 %v119, 2147483648
      %v147 = vor.u32 1.1754944e-38, %v146
      %v148 = vsel %vm145, %v147, %v143
      %v149 = vmul.f32 1.0, %v148
      %v150 = vmul.f32 %v134, 1.0614054
      %v151 = vmul.f32 %v149, 1.0614054
      %v152 = vsub.f32 %v150, 1.4531521
      %v153 = vsub.f32 %v151, 1.4531521
      %v154 = vmul.f32 %v152, %v134
      %v155 = vmul.f32 %v153, %v149
      %v156 = vadd.f32 %v154, 1.4214138
      %v157 = vadd.f32 %v155, 1.4214138
      %v158 = vmul.f32 %v156, %v134
      %v159 = vmul.f32 %v157, %v149
      %v160 = vsub.f32 %v158, 0.28449672
      %v161 = vsub.f32 %v159, 0.28449672
      %v162 = vmul.f32 %v160, %v134
      %v163 = vmul.f32 %v161, %v149
      %v164 = vadd.f32 %v162, 0.2548296
      %v165 = vadd.f32 %v163, 0.2548296
      %v166 = vmul.f32 %v164, %v134
      %v167 = vmul.f32 %v165, %v149
      %v168 = vsub.f32 0.0, %v114
      %v169 = vsub.f32 0.0, %v115
      %v170 = vmul.f32 %v168, %v114
      %v171 = vmul.f32 %v169, %v115
      %v172 = vmul.f32 %v170, 1.442695
      %v173 = vpow.pop %v172
      %v174 = vmul.f32 %v171, 1.442695
      %v175 = vpow.pop %v174
      %v176 = vmul.f32 %v166, %v173
      %v177 = vmul.f32 %v167, %v175
      %v178 = vsub.f32 1.0, %v176
      %v179 = vsub.f32 1.0, %v177
      %vm180 = vcmp.ge.f32.partialorder %v112, 0.0
      %vm181 = vcmp.ge.f32.partialorder %v113, 0.0
      %v182 = vsub.f32 0.0, %v178
      %v183 = vsub.f32 0.0, %v179
      %v184 = vsel %vm180, %v178, %v182
      %v185 = vsel %vm181, %v179, %v183
      %v186 = vmul.f32 %v107, 0.5
      %v187 = vmul.f32 %v110, 0.5
      %v188 = vadd.f32 %v184, 1.0
      %v189 = vadd.f32 %v185, 1.0
      %v190 = vmul.f32 %v186, %v188
      %v191 = vmul.f32 %v187, %v189
      %vm192 = vcmask 523264
      %193 = vst.msk [vmem:[#allocation2] sm:$0xff] %vm192, %v190
      %194 = vst.msk [vmem:[#allocation2 + $0x8] sm:$0xff] %vm192, %v191
    $region37: #{tpu_custom_call.1} parent=1 // pred_fallthru
      _
    %v195 = vld [vmem:[#allocation2] sm:$0xff]
    %v196 = vld [vmem:[#allocation2 + $0x8] sm:$0xff]
    %v197 = vld [vmem:[#allocation8] sm:$0xff]
    %v198 = vld [vmem:[#allocation8 + $0x8] sm:$0xff]
    %v199 = vld [vmem:[#allocation8 + $0x10] sm:$0xff]
    %v200 = vld [vmem:[#allocation8 + $0x18] sm:$0xff]
    %v201 = vld [vmem:[#allocation8 + $0x20] sm:$0xff]
    %v202 = vld [vmem:[#allocation8 + $0x28] sm:$0xff]
    %v203 = vld [vmem:[#allocation8 + $0x30] sm:$0xff]
    %v204 = vld [vmem:[#allocation8 + $0x38] sm:$0xff]
    %v205 = vld [vmem:[%s4] sm:$0x1]
    %v207 = vperm.slane %v205, 0
    %vm209 = vcmask 523264
    %v211 = vsel %vm209, %v195, 0
    %v214 = vsel %vm209, %v196, 0
    %216 = vmatpush.msra.mxu0 0.0
    %217 = vmatpush.msra.mxu0 0.0
    %218 = vmatpush.msra.mxu0 0.0
    %219 = vmatpush.msra.mxu0 0.0
    %220 = vmatpush.msra.mxu0 0.0
    %221 = vmatpush.msra.mxu0 0.0
    %222 = vmatpush.msra.mxu0 0.0
    %223 = vmatpush.msra.mxu0 0.0
    %224 = vmatpush.msra.mxu0 %v204
    %225 = vmatpush.msra.mxu0 %v203
    %226 = vmatpush.msra.mxu0 %v202
    %227 = vmatpush.msra.mxu0 %v201
    %228 = vmatpush.msra.mxu0 %v200
    %229 = vmatpush.msra.mxu0 %v199
    %230 = vmatpush.msra.mxu0 %v198
    %231 = vmatpush.msra.mxu0 %v197
    %232 = vmatmul.f32.gmra.mxu0 %v211
    %v233 = vpop.f32.mrf.mxu0
    %v234 = vadd.f32 %v207, %v233
    %235 = vmatmul.f32.gmra.mxu0 %v214
    %v236 = vpop.f32.mrf.mxu0
    %v237 = vadd.f32 %v207, %v236
    %238 = vdwg.mxu0
    %239 = vst [vmem:[#allocation9] sm:$0xff] %v234
    %240 = vst [vmem:[#allocation9 + $0x8] sm:$0xff] %v237
    // Predicated region
    $region38: #{tpu_custom_call.1} parent=1 // pred_check
      _
    $region39: #{tpu_custom_call.1} parent=1 // pred_check_branch
      %242 = sbr.rel (0) target = $region41
    $region40: #{tpu_custom_call.1} parent=1 // pred_region
      %244 = vsyncadd [#allocation5], 0
      %s245 = sshll.u32 [#allocation9], 4
      %s246 = int_to_ptr.vmem [resolvable:$true] %s245
      %s247 = sshll.u32 %s5, 4
      %s248 = int_to_ptr.hbm [resolvable:$true] %s247
      %253 = dma.vmem_to_hbm [thread:$0]  %s246, 256, %s248, [#allocation5], 128, 128, 8
    $region41: #{tpu_custom_call.1} parent=1 // pred_fallthru
      _
    // Predicated region
    $region42: #{tpu_custom_call.1} parent=1 // pred_check
      _
    $region43: #{tpu_custom_call.1} parent=1 // pred_check_branch
      %255 = sbr.rel (0) target = $region45
    $region44: #{tpu_custom_call.1} parent=1 // pred_region
      %257 = dma.done [#allocation5], 256
    $region45: #{tpu_custom_call.1} parent=1 // pred_fallthru
      _
    %258 = vsyncpa [#allocation4], 1
    %259 = vsyncpa [#allocation7], 1
    %260 = vsyncpa [#allocation5], 1

</llo_original>
